<compile_context>
chip_gen: v5e
topology: v5e:2x2
jax: 0.10.0
libtpu: 0.0.40
codegen_flags: <defaults>
</compile_context>

<pallas_src>
import functools

import jax
import jax.numpy as jnp
from jax import lax
from jax.experimental import pallas as pl
from jax.experimental.pallas import tpu as pltpu


def _round_up(x, m):
    return ((x + m - 1) // m) * m


def _cdiv(a, b):
    return (a + b - 1) // b


# ---------------------------------------------------------------------------
# Pallas kernel.  Grid = (P-tiles, M-chunks).  Per grid step it builds the
# squared-hinge chunk for the "old" and current scores, accumulates the
# all-column / positive-column row sums into (Pb, 1) VMEM scratch, and on the
# last M-chunk emits [dpos, dall, row_loss] for the row tile.
# ---------------------------------------------------------------------------
def _stoap_kernel(fps_ref, fps2_ref, vec_ref, vec2_ref, upos_ref, uall_ref,
                  out_ref,
                  all_acc, pos_acc, all2_acc, pos2_acc,
                  *, threshold, alpha, lmt, num_pos, num_col):
    j = pl.program_id(1)              # M-chunk index (reduction axis, last)
    mc = vec_ref.shape[1]
    f32 = jnp.float32

    @pl.when(j == 0)
    def _init():
        all_acc[...] = jnp.zeros_like(all_acc)
        pos_acc[...] = jnp.zeros_like(pos_acc)
        all2_acc[...] = jnp.zeros_like(all2_acc)
        pos2_acc[...] = jnp.zeros_like(pos2_acc)

    # Chunk classification w.r.t. the positive-column prefix [0, num_pos).
    chunk_start = j * mc
    fully_pos = (chunk_start + mc) <= num_pos
    straddle = jnp.logical_and(chunk_start < num_pos,
                               (chunk_start + mc) > num_pos)
    # fully-negative chunks (chunk_start >= num_pos) do no pos-sum work.

    # "Old" (detached) scores first so their (Pb, Mc) temporary is dead before
    # the current-score hinge is materialized (bounds vreg/VMEM pressure).
    tmf2 = f32(threshold) - fps2_ref[...]                     # (Pb, 1)
    h2 = jnp.maximum(tmf2 + vec2_ref[...], 0.0)               # (Pb, Mc)
    h2 = h2 * h2
    s2_all = jnp.sum(h2, axis=1, keepdims=True)               # (Pb, 1)
    all2_acc[...] += s2_all

    @pl.when(fully_pos)
    def _():
        pos2_acc[...] += s2_all

    @pl.when(straddle)
    def _():
        col = lax.broadcasted_iota(jnp.int32, (1, mc), 1) + chunk_start
        is_pos = col < num_pos
        pos2_acc[...] += jnp.sum(jnp.where(is_pos, h2, 0.0),
                                 axis=1, keepdims=True)

    # Current scores.
    tmf = f32(threshold) - fps_ref[...]                       # (Pb, 1)
    h = jnp.maximum(tmf + vec_ref[...], 0.0)                  # (Pb, Mc)
    h = h * h
    s_all = jnp.sum(h, axis=1, keepdims=True)
    all_acc[...] += s_all

    @pl.when(fully_pos)
    def _():
        pos_acc[...] += s_all

    @pl.when(straddle)
    def _():
        col = lax.broadcasted_iota(jnp.int32, (1, mc), 1) + chunk_start
        is_pos = col < num_pos
        pos_acc[...] += jnp.sum(jnp.where(is_pos, h, 0.0),
                                axis=1, keepdims=True)

    @pl.when(j == pl.num_programs(1) - 1)
    def _finalize():
        one_m_a = f32(1.0 - alpha)
        scale = f32(lmt / num_col)        # lmt * (row mean over the M columns)

        all_sum = all_acc[...]            # (Pb, 1)
        pos_sum = pos_acc[...]
        dpos = (pos_sum - one_m_a * pos2_acc[...]) * scale
        dall = (all_sum - one_m_a * all2_acc[...]) * scale

        # state value at index_s after this step's moving-average update
        u_pos_new = one_m_a * upos_ref[...] + dpos
        u_all_new = one_m_a * uall_ref[...] + dall

        # p = u_pos/u_all^2 - pos_mask/u_all  =>  sum_M(p * hinge)
        #   = (u_pos/u_all^2) * all_sum - (1/u_all) * pos_sum
        inv_u = pl.reciprocal(u_all_new, approx=False)
        row_loss = u_pos_new * inv_u * inv_u * all_sum - inv_u * pos_sum

        # Consolidated (Pb, 3) output slab: direct column stores.
        out_ref[:, 0:1] = dpos
        out_ref[:, 1:2] = dall
        out_ref[:, 2:3] = row_loss


# ---------------------------------------------------------------------------
# Wrapper: per-generation tiling defaults, padding, pallas_call, state glue.
# ---------------------------------------------------------------------------
def _default_tiling():
    """Per-generation defaults: (block_p, block_m, vmem_limit_bytes)."""
    try:
        kind = jax.devices()[0].device_kind.lower()
    except Exception:  # pragma: no cover - defensive only
        kind = ""
    if "v5" in kind or "v6" in kind:
        # 128 MiB VMEM: long lane chunks amortize per-grid-step overhead.
        # (v5e's 16 MiB scoped default makes the explicit limit mandatory.)
        return 128, 8192, 96 * 1024 * 1024
    # v7x (64 MiB physical VMEM, 2 TCs) and unknown generations: conservative.
    return 128, 2048, 32 * 1024 * 1024


def stoap_loss_forward(f_ps, f_ns, f_ps_, f_ns_, index_s, u_all, u_pos,
                       *, margin, lmt, alpha=0.1,
                       block_p=None, block_m=None, vmem_limit_bytes=None):
    """Returns (scalar loss, new u_all, new u_pos)."""
    f32 = jnp.float32
    def_bp, def_bm, def_vmem = _default_tiling()
    block_p = def_bp if block_p is None else block_p
    block_m = def_bm if block_m is None else block_m
    vmem_limit_bytes = def_vmem if vmem_limit_bytes is None else vmem_limit_bytes

    f_ps = jnp.reshape(f_ps, (-1,)).astype(f32)
    f_ns = jnp.reshape(f_ns, (-1,)).astype(f32)
    f_ps_ = jnp.reshape(f_ps_, (-1,)).astype(f32)
    f_ns_ = jnp.reshape(f_ns_, (-1,)).astype(f32)

    P = f_ps.shape[0]
    M = P + f_ns.shape[0]

    # Balanced row tiling (sublane-aligned): last tile is not mostly padding.
    n_row_tiles = _cdiv(P, block_p)
    pb = _round_up(_cdiv(P, n_row_tiles), 8)
    p_pad = _round_up(P, pb)

    # Balanced, 128-aligned lane chunking (single chunk if M fits).
    if M <= block_m:
        mc = M
        m_pad = M
    else:
        n_col = _cdiv(M, block_m)
        mc = _round_up(_cdiv(M, n_col), 128)
        m_pad = _round_up(M, mc)

    # Padding values are chosen so padded rows/columns contribute exactly zero
    # hinge loss (score pads drive the hinge argument far below 0; u pads of
    # 1.0 keep 1/u_all finite on the dead rows).
    vec = jnp.concatenate([f_ps, f_ns])
    vec_ = jnp.concatenate([f_ps_, f_ns_])
    vec = jnp.pad(vec, (0, m_pad - M), constant_values=-1e9).reshape(1, m_pad)
    vec_ = jnp.pad(vec_, (0, m_pad - M), constant_values=-1e9).reshape(1, m_pad)
    fps_col = jnp.pad(f_ps, (0, p_pad - P), constant_values=1e9).reshape(p_pad, 1)
    fps_col_ = jnp.pad(f_ps_, (0, p_pad - P), constant_values=1e9).reshape(p_pad, 1)

    # TODO(synk): u gather / scatter-add state update kept in plain JAX
    # (data-dependent indexing glue); assumes index_s entries are unique.
    u_pos_sel = jnp.pad(u_pos[index_s, 0], (0, p_pad - P),
                        constant_values=1.0).reshape(p_pad, 1)
    u_all_sel = jnp.pad(u_all[index_s, 0], (0, p_pad - P),
                        constant_values=1.0).reshape(p_pad, 1)

    kernel = functools.partial(_stoap_kernel,
                               threshold=float(margin),
                               alpha=float(alpha),
                               lmt=float(lmt),
                               num_pos=P,
                               num_col=M)

    grid = (p_pad // pb, m_pad // mc)

    out = pl.pallas_call(
        kernel,
        out_shape=jax.ShapeDtypeStruct((p_pad, 3), f32),
        grid=grid,
        in_specs=[
            pl.BlockSpec((pb, 1), lambda i, j: (i, 0)),     # f_ps column
            pl.BlockSpec((pb, 1), lambda i, j: (i, 0)),     # f_ps_ column
            pl.BlockSpec((1, mc), lambda i, j: (0, j)),     # cat(f_ps, f_ns)
            pl.BlockSpec((1, mc), lambda i, j: (0, j)),     # cat(f_ps_, f_ns_)
            pl.BlockSpec((pb, 1), lambda i, j: (i, 0)),     # u_pos[index_s]
            pl.BlockSpec((pb, 1), lambda i, j: (i, 0)),     # u_all[index_s]
        ],
        out_specs=pl.BlockSpec((pb, 3), lambda i, j: (i, 0)),
        scratch_shapes=[pltpu.VMEM((pb, 1), f32),   # all_sum  (current scores)
                        pltpu.VMEM((pb, 1), f32),   # pos_sum  (current scores)
                        pltpu.VMEM((pb, 1), f32),   # all_sum  (old scores)
                        pltpu.VMEM((pb, 1), f32)],  # pos_sum  (old scores)
        compiler_params=pltpu.CompilerParams(
            dimension_semantics=("parallel", "arbitrary"),
            vmem_limit_bytes=vmem_limit_bytes),
    )(fps_col, fps_col_, vec, vec_, u_pos_sel, u_all_sel)

    dpos = out[:P, 0]
    dall = out[:P, 1]
    loss = jnp.sum(out[:P, 2]) / float(P * M)       # torch.mean(p * loss)

    # glue: state update = decay everything, scatter-add deltas at index_s
    u_pos_new = (1.0 - alpha) * u_pos
    u_all_new = (1.0 - alpha) * u_all
    u_pos_new = u_pos_new.at[index_s, 0].add(dpos)
    u_all_new = u_all_new.at[index_s, 0].add(dall)

    return loss, u_all_new, u_pos_new


# ---------------------------------------------------------------------------
# Pure-JAX reference (line-for-line port of the PyTorch forward) for checking.
# ---------------------------------------------------------------------------
def stoap_loss_reference(f_ps, f_ns, f_ps_, f_ns_, index_s, u_all, u_pos,
                         *, margin, lmt, alpha=0.1):
    f_ps = jnp.reshape(f_ps, (-1,))
    f_ns = jnp.reshape(f_ns, (-1,))
    f_ps_ = jnp.reshape(f_ps_, (-1,))
    f_ns_ = jnp.reshape(f_ns_, (-1,))
    P = f_ps.shape[0]
    vec = jnp.concatenate([f_ps, f_ns])
    mat = jnp.tile(vec, (P, 1))
    vec_ = jnp.concatenate([f_ps_, f_ns_])
    mat_ = jnp.tile(vec_, (P, 1))
    fps = f_ps.reshape(-1, 1)
    fps_ = f_ps_.reshape(-1, 1)
    neg_mask = jnp.ones_like(mat).at[:, 0:P].set(0.0)
    pos_mask = jnp.zeros_like(mat).at[:, 0:P].set(1.0)
    neg_loss = jnp.maximum(margin - (fps - mat), 0.0) ** 2 * neg_mask
    pos_loss = jnp.maximum(margin - (fps - mat), 0.0) ** 2 * pos_mask
    neg_loss_ = jnp.maximum(margin - (fps_ - mat_), 0.0) ** 2 * neg_mask
    pos_loss_ = jnp.maximum(margin - (fps_ - mat_), 0.0) ** 2 * pos_mask
    loss = pos_loss + neg_loss
    loss_ = pos_loss_ + neg_loss_
    u_pos = (1 - alpha) * u_pos
    u_all = (1 - alpha) * u_all
    u_pos = u_pos.at[index_s].add(
        (pos_loss.mean(1, keepdims=True)
         - (1 - alpha) * pos_loss_.mean(1, keepdims=True)) * lmt)
    u_all = u_all.at[index_s].add(
        (loss.mean(1, keepdims=True)
         - (1 - alpha) * loss_.mean(1, keepdims=True)) * lmt)
    p = (u_pos[index_s] - u_all[index_s] * pos_mask) / u_all[index_s] ** 2
    out = jnp.mean(p * loss)
    return out, u_all, u_pos


def _run_case(key, P, N, data_length, margin, lmt, alpha, name, **tile_kwargs):
    k1, k2, k3, k4, k5, k6 = jax.random.split(key, 6)
    f_ps = jax.nn.sigmoid(jax.random.normal(k1, (P, 1), jnp.float32))
    f_ns = jax.nn.sigmoid(jax.random.normal(k2, (N, 1), jnp.float32))
    f_ps_ = jax.nn.sigmoid(jax.random.normal(k3, (P, 1), jnp.float32))
    f_ns_ = jax.nn.sigmoid(jax.random.normal(k4, (N, 1), jnp.float32))
    index_s = jax.random.permutation(k5, data_length)[:P].astype(jnp.int32)

    # module state buffers (non-zero so u_all^2 division is well conditioned)
    u_all = 0.5 + 0.1 * jax.nn.sigmoid(
        jax.random.normal(k6, (data_length, 1), jnp.float32))
    u_pos = 0.25 * u_all

    loss, u_all_new, u_pos_new = stoap_loss_forward(
        f_ps, f_ns, f_ps_, f_ns_, index_s, u_all, u_pos,
        margin=margin, lmt=lmt, alpha=alpha, **tile_kwargs)
    jax.block_until_ready((loss, u_all_new, u_pos_new))

    ref_loss, ref_u_all, ref_u_pos = stoap_loss_reference(
        f_ps, f_ns, f_ps_, f_ns_, index_s, u_all, u_pos,
        margin=margin, lmt=lmt, alpha=alpha)

    assert jnp.allclose(loss, ref_loss, rtol=5e-4, atol=1e-5), \
        (name, loss, ref_loss)
    assert jnp.allclose(u_all_new, ref_u_all, rtol=5e-4, atol=1e-5), name
    assert jnp.allclose(u_pos_new, ref_u_pos, rtol=5e-4, atol=1e-5), name


if __name__ == "__main__":
    key = jax.random.PRNGKey(0)
    k_small, k_big = jax.random.split(key, 2)

    margin = 1.0
    total_p_num = 64
    pos_num = 16
    lmt = min(total_p_num / pos_num, 1.5)   # -> 1.5
    alpha = 0.1

    # Case 1: original tiny demo shape (single tile / single chunk,
    # straddling-chunk path).
    _run_case(k_small, P=8, N=24, data_length=64,
              margin=margin, lmt=lmt, alpha=alpha, name="small")

    # Case 2: larger shape with explicit small tiles so the run exercises
    # P-tiling ("parallel" axis), M chunking ("arbitrary" axis), row/column
    # padding, and all three chunk specializations (fully-positive,
    # straddling, fully-negative).
    _run_case(k_big, P=300, N=3000, data_length=4096,
              margin=margin, lmt=lmt, alpha=alpha, name="large",
              block_p=128, block_m=256)

    print("KERNEL_OK")
</pallas_src>

<mosaic_0001>
module attributes {stable_mosaic.version = 11 : i64} {
  func.func @_stoap_kernel(%arg0: i32, %arg1: i32, %arg2: memref<8x1xf32, #tpu.memory_space<vmem>>, %arg3: memref<8x1xf32, #tpu.memory_space<vmem>>, %arg4: memref<1x32xf32, #tpu.memory_space<vmem>>, %arg5: memref<1x32xf32, #tpu.memory_space<vmem>>, %arg6: memref<8x1xf32, #tpu.memory_space<vmem>>, %arg7: memref<8x1xf32, #tpu.memory_space<vmem>>, %arg8: memref<8x3xf32, #tpu.memory_space<vmem>>, %arg9: memref<8x1xf32, #tpu.memory_space<vmem>>, %arg10: memref<8x1xf32, #tpu.memory_space<vmem>>, %arg11: memref<8x1xf32, #tpu.memory_space<vmem>>, %arg12: memref<8x1xf32, #tpu.memory_space<vmem>>) attributes {dimension_semantics = [#tpu.dimension_semantics<parallel>, #tpu.dimension_semantics<arbitrary>], iteration_bounds = array<i64: 1, 1>, scalar_prefetch = 0 : i64, scratch_operands = 4 : i64, tpu.core_type = #tpu.core_type<tc>, window_params = [{transform_indices = @transform_0, window_bounds = array<i64: 8, 1>}, {transform_indices = @transform_1, window_bounds = array<i64: 8, 1>}, {transform_indices = @transform_2, window_bounds = array<i64: 1, 32>}, {transform_indices = @transform_3, window_bounds = array<i64: 1, 32>}, {transform_indices = @transform_4, window_bounds = array<i64: 8, 1>}, {transform_indices = @transform_5, window_bounds = array<i64: 8, 1>}, {transform_indices = @transform_6, window_bounds = array<i64: 8, 3>}]} {
    %c0_i32 = arith.constant 0 : i32
    %0 = arith.cmpi eq, %arg1, %c0_i32 : i32
    %1 = arith.extui %0 : i1 to i32
    %c0_i32_0 = arith.constant 0 : i32
    %2 = arith.cmpi ne, %1, %c0_i32_0 : i32
    scf.if %2 {
      %cst_31 = arith.constant 0.000000e+00 : f32
      %51 = vector.broadcast %cst_31 : f32 to vector<8x1xf32>
      %c0_32 = arith.constant 0 : index
      %c0_33 = arith.constant 0 : index
      %52 = vector.load %arg9[%c0_32, %c0_33] : memref<8x1xf32, #tpu.memory_space<vmem>>, vector<8x1xf32>
      tpu.vector_store %arg9[%c0_32, %c0_33], %51 {strides = array<i32>} : memref<8x1xf32, #tpu.memory_space<vmem>>, vector<8x1xf32>,
      %cst_34 = arith.constant 0.000000e+00 : f32
      %53 = vector.broadcast %cst_34 : f32 to vector<8x1xf32>
      %c0_35 = arith.constant 0 : index
      %c0_36 = arith.constant 0 : index
      %54 = vector.load %arg10[%c0_35, %c0_36] : memref<8x1xf32, #tpu.memory_space<vmem>>, vector<8x1xf32>
      tpu.vector_store %arg10[%c0_35, %c0_36], %53 {strides = array<i32>} : memref<8x1xf32, #tpu.memory_space<vmem>>, vector<8x1xf32>,
      %cst_37 = arith.constant 0.000000e+00 : f32
      %55 = vector.broadcast %cst_37 : f32 to vector<8x1xf32>
      %c0_38 = arith.constant 0 : index
      %c0_39 = arith.constant 0 : index
      %56 = vector.load %arg11[%c0_38, %c0_39] : memref<8x1xf32, #tpu.memory_space<vmem>>, vector<8x1xf32>
      tpu.vector_store %arg11[%c0_38, %c0_39], %55 {strides = array<i32>} : memref<8x1xf32, #tpu.memory_space<vmem>>, vector<8x1xf32>,
      %cst_40 = arith.constant 0.000000e+00 : f32
      %57 = vector.broadcast %cst_40 : f32 to vector<8x1xf32>
      %c0_41 = arith.constant 0 : index
      %c0_42 = arith.constant 0 : index
      %58 = vector.load %arg12[%c0_41, %c0_42] : memref<8x1xf32, #tpu.memory_space<vmem>>, vector<8x1xf32>
      tpu.vector_store %arg12[%c0_41, %c0_42], %57 {strides = array<i32>} : memref<8x1xf32, #tpu.memory_space<vmem>>, vector<8x1xf32>,
    } else {
    }
    %c32_i32 = arith.constant 32 : i32
    %3 = arith.muli %arg1, %c32_i32 : i32
    %c32_i32_1 = arith.constant 32 : i32
    %4 = arith.addi %3, %c32_i32_1 : i32
    %c8_i32 = arith.constant 8 : i32
    %5 = arith.cmpi sle, %4, %c8_i32 : i32
    %c8_i32_2 = arith.constant 8 : i32
    %6 = arith.cmpi slt, %3, %c8_i32_2 : i32
    %c32_i32_3 = arith.constant 32 : i32
    %7 = arith.addi %3, %c32_i32_3 : i32
    %c8_i32_4 = arith.constant 8 : i32
    %8 = arith.cmpi sgt, %7, %c8_i32_4 : i32
    %9 = arith.andi %6, %8 : i1
    %c0 = arith.constant 0 : index
    %c0_5 = arith.constant 0 : index
    %10 = vector.load %arg3[%c0, %c0_5] : memref<8x1xf32, #tpu.memory_space<vmem>>, vector<8x1xf32>
    %cst = arith.constant 1.000000e+00 : f32
    %11 = vector.broadcast %cst : f32 to vector<8x1xf32>
    %12 = arith.subf %11, %10 : vector<8x1xf32>
    %c0_6 = arith.constant 0 : index
    %c0_7 = arith.constant 0 : index
    %13 = vector.load %arg5[%c0_6, %c0_7] : memref<1x32xf32, #tpu.memory_space<vmem>>, vector<1x32xf32>
    %14 = vector.broadcast %12 : vector<8x1xf32> to vector<8x32xf32>
    %15 = vector.broadcast %13 : vector<1x32xf32> to vector<8x32xf32>
    %16 = arith.addf %14, %15 : vector<8x32xf32>
    %cst_8 = arith.constant 0.000000e+00 : f32
    %17 = vector.broadcast %cst_8 : f32 to vector<8x32xf32>
    %18 = arith.maximumf %16, %17 : vector<8x32xf32>
    %19 = arith.mulf %18, %18 : vector<8x32xf32>
    %cst_9 = arith.constant dense<0.000000e+00> : vector<8xf32>
    %20 = vector.multi_reduction <add>, %19, %cst_9 [1] : vector<8x32xf32> to vector<8xf32>
    %21 = vector.shape_cast %20 : vector<8xf32> to vector<8x1xf32>
    %c0_10 = arith.constant 0 : index
    %c0_11 = arith.constant 0 : index
    %22 = vector.load %arg11[%c0_10, %c0_11] : memref<8x1xf32, #tpu.memory_space<vmem>>, vector<8x1xf32>
    %23 = arith.addf %22, %21 : vector<8x1xf32>
    %c0_12 = arith.constant 0 : index
    %c0_13 = arith.constant 0 : index
    %24 = vector.load %arg11[%c0_12, %c0_13] : memref<8x1xf32, #tpu.memory_space<vmem>>, vector<8x1xf32>
    tpu.vector_store %arg11[%c0_12, %c0_13], %23 {strides = array<i32>} : memref<8x1xf32, #tpu.memory_space<vmem>>, vector<8x1xf32>,
    %25 = arith.extui %5 : i1 to i32
    %c0_i32_14 = arith.constant 0 : i32
    %26 = arith.cmpi ne, %25, %c0_i32_14 : i32
    scf.if %26 {
      %c0_31 = arith.constant 0 : index
      %c0_32 = arith.constant 0 : index
      %51 = vector.load %arg12[%c0_31, %c0_32] : memref<8x1xf32, #tpu.memory_space<vmem>>, vector<8x1xf32>
      %52 = arith.addf %51, %21 : vector<8x1xf32>
      %c0_33 = arith.constant 0 : index
      %c0_34 = arith.constant 0 : index
      %53 = vector.load %arg12[%c0_33, %c0_34] : memref<8x1xf32, #tpu.memory_space<vmem>>, vector<8x1xf32>
      tpu.vector_store %arg12[%c0_33, %c0_34], %52 {strides = array<i32>} : memref<8x1xf32, #tpu.memory_space<vmem>>, vector<8x1xf32>,
    } else {
    }
    %27 = arith.extui %9 : i1 to i32
    %c0_i32_15 = arith.constant 0 : i32
    %28 = arith.cmpi ne, %27, %c0_i32_15 : i32
    scf.if %28 {
      %51 = tpu.iota {dimensions = array<i32: 1>} : vector<1x32xi32>
      %52 = vector.broadcast %3 : i32 to vector<1x32xi32>
      %53 = arith.addi %51, %52 : vector<1x32xi32>
      %c8_i32_31 = arith.constant 8 : i32
      %54 = vector.broadcast %c8_i32_31 : i32 to vector<1x32xi32>
      %55 = arith.cmpi slt, %53, %54 : vector<1x32xi32>
      %c0_32 = arith.constant 0 : index
      %c0_33 = arith.constant 0 : index
      %56 = vector.load %arg12[%c0_32, %c0_33] : memref<8x1xf32, #tpu.memory_space<vmem>>, vector<8x1xf32>
      %cst_34 = arith.constant 0.000000e+00 : f32
      %57 = vector.shape_cast %55 : vector<1x32xi1> to vector<1x32xi1>
      %58 = vector.broadcast %57 : vector<1x32xi1> to vector<8x32xi1>
      %59 = vector.broadcast %cst_34 : f32 to vector<8x32xf32>
      %60 = arith.select %58, %19, %59 : vector<8x32xi1>, vector<8x32xf32>
      %cst_35 = arith.constant dense<0.000000e+00> : vector<8xf32>
      %61 = vector.multi_reduction <add>, %60, %cst_35 [1] : vector<8x32xf32> to vector<8xf32>
      %62 = vector.shape_cast %61 : vector<8xf32> to vector<8x1xf32>
      %63 = arith.addf %56, %62 : vector<8x1xf32>
      %c0_36 = arith.constant 0 : index
      %c0_37 = arith.constant 0 : index
      %64 = vector.load %arg12[%c0_36, %c0_37] : memref<8x1xf32, #tpu.memory_space<vmem>>, vector<8x1xf32>
      tpu.vector_store %arg12[%c0_36, %c0_37], %63 {strides = array<i32>} : memref<8x1xf32, #tpu.memory_space<vmem>>, vector<8x1xf32>,
    } else {
    }
    %c0_16 = arith.constant 0 : index
    %c0_17 = arith.constant 0 : index
    %29 = vector.load %arg2[%c0_16, %c0_17] : memref<8x1xf32, #tpu.memory_space<vmem>>, vector<8x1xf32>
    %cst_18 = arith.constant 1.000000e+00 : f32
    %30 = vector.broadcast %cst_18 : f32 to vector<8x1xf32>
    %31 = arith.subf %30, %29 : vector<8x1xf32>
    %c0_19 = arith.constant 0 : index
    %c0_20 = arith.constant 0 : index
    %32 = vector.load %arg4[%c0_19, %c0_20] : memref<1x32xf32, #tpu.memory_space<vmem>>, vector<1x32xf32>
    %33 = vector.broadcast %31 : vector<8x1xf32> to vector<8x32xf32>
    %34 = vector.broadcast %32 : vector<1x32xf32> to vector<8x32xf32>
    %35 = arith.addf %33, %34 : vector<8x32xf32>
    %cst_21 = arith.constant 0.000000e+00 : f32
    %36 = vector.broadcast %cst_21 : f32 to vector<8x32xf32>
    %37 = arith.maximumf %35, %36 : vector<8x32xf32>
    %38 = arith.mulf %37, %37 : vector<8x32xf32>
    %cst_22 = arith.constant dense<0.000000e+00> : vector<8xf32>
    %39 = vector.multi_reduction <add>, %38, %cst_22 [1] : vector<8x32xf32> to vector<8xf32>
    %40 = vector.shape_cast %39 : vector<8xf32> to vector<8x1xf32>
    %c0_23 = arith.constant 0 : index
    %c0_24 = arith.constant 0 : index
    %41 = vector.load %arg9[%c0_23, %c0_24] : memref<8x1xf32, #tpu.memory_space<vmem>>, vector<8x1xf32>
    %42 = arith.addf %41, %40 : vector<8x1xf32>
    %c0_25 = arith.constant 0 : index
    %c0_26 = arith.constant 0 : index
    %43 = vector.load %arg9[%c0_25, %c0_26] : memref<8x1xf32, #tpu.memory_space<vmem>>, vector<8x1xf32>
    tpu.vector_store %arg9[%c0_25, %c0_26], %42 {strides = array<i32>} : memref<8x1xf32, #tpu.memory_space<vmem>>, vector<8x1xf32>,
    %44 = arith.extui %5 : i1 to i32
    %c0_i32_27 = arith.constant 0 : i32
    %45 = arith.cmpi ne, %44, %c0_i32_27 : i32
    scf.if %45 {
      %c0_31 = arith.constant 0 : index
      %c0_32 = arith.constant 0 : index
      %51 = vector.load %arg10[%c0_31, %c0_32] : memref<8x1xf32, #tpu.memory_space<vmem>>, vector<8x1xf32>
      %52 = arith.addf %51, %40 : vector<8x1xf32>
      %c0_33 = arith.constant 0 : index
      %c0_34 = arith.constant 0 : index
      %53 = vector.load %arg10[%c0_33, %c0_34] : memref<8x1xf32, #tpu.memory_space<vmem>>, vector<8x1xf32>
      tpu.vector_store %arg10[%c0_33, %c0_34], %52 {strides = array<i32>} : memref<8x1xf32, #tpu.memory_space<vmem>>, vector<8x1xf32>,
    } else {
    }
    %46 = arith.extui %9 : i1 to i32
    %c0_i32_28 = arith.constant 0 : i32
    %47 = arith.cmpi ne, %46, %c0_i32_28 : i32
    scf.if %47 {
      %51 = tpu.iota {dimensions = array<i32: 1>} : vector<1x32xi32>
      %52 = vector.broadcast %3 : i32 to vector<1x32xi32>
      %53 = arith.addi %51, %52 : vector<1x32xi32>
      %c8_i32_31 = arith.constant 8 : i32
      %54 = vector.broadcast %c8_i32_31 : i32 to vector<1x32xi32>
      %55 = arith.cmpi slt, %53, %54 : vector<1x32xi32>
      %c0_32 = arith.constant 0 : index
      %c0_33 = arith.constant 0 : index
      %56 = vector.load %arg10[%c0_32, %c0_33] : memref<8x1xf32, #tpu.memory_space<vmem>>, vector<8x1xf32>
      %cst_34 = arith.constant 0.000000e+00 : f32
      %57 = vector.shape_cast %55 : vector<1x32xi1> to vector<1x32xi1>
      %58 = vector.broadcast %57 : vector<1x32xi1> to vector<8x32xi1>
      %59 = vector.broadcast %cst_34 : f32 to vector<8x32xf32>
      %60 = arith.select %58, %38, %59 : vector<8x32xi1>, vector<8x32xf32>
      %cst_35 = arith.constant dense<0.000000e+00> : vector<8xf32>
      %61 = vector.multi_reduction <add>, %60, %cst_35 [1] : vector<8x32xf32> to vector<8xf32>
      %62 = vector.shape_cast %61 : vector<8xf32> to vector<8x1xf32>
      %63 = arith.addf %56, %62 : vector<8x1xf32>
      %c0_36 = arith.constant 0 : index
      %c0_37 = arith.constant 0 : index
      %64 = vector.load %arg10[%c0_36, %c0_37] : memref<8x1xf32, #tpu.memory_space<vmem>>, vector<8x1xf32>
      tpu.vector_store %arg10[%c0_36, %c0_37], %63 {strides = array<i32>} : memref<8x1xf32, #tpu.memory_space<vmem>>, vector<8x1xf32>,
    } else {
    }
    %c0_i32_29 = arith.constant 0 : i32
    %48 = arith.cmpi eq, %arg1, %c0_i32_29 : i32
    %49 = arith.extui %48 : i1 to i32
    %c0_i32_30 = arith.constant 0 : i32
    %50 = arith.cmpi ne, %49, %c0_i32_30 : i32
    scf.if %50 {
      %c0_31 = arith.constant 0 : index
      %c0_32 = arith.constant 0 : index
      %51 = vector.load %arg9[%c0_31, %c0_32] : memref<8x1xf32, #tpu.memory_space<vmem>>, vector<8x1xf32>
      %c0_33 = arith.constant 0 : index
      %c0_34 = arith.constant 0 : index
      %52 = vector.load %arg10[%c0_33, %c0_34] : memref<8x1xf32, #tpu.memory_space<vmem>>, vector<8x1xf32>
      %c0_35 = arith.constant 0 : index
      %c0_36 = arith.constant 0 : index
      %53 = vector.load %arg12[%c0_35, %c0_36] : memref<8x1xf32, #tpu.memory_space<vmem>>, vector<8x1xf32>
      %cst_37 = arith.constant 0.899999976 : f32
      %54 = vector.broadcast %cst_37 : f32 to vector<8x1xf32>
      %55 = arith.mulf %54, %53 : vector<8x1xf32>
      %56 = arith.subf %52, %55 : vector<8x1xf32>
      %cst_38 = arith.constant 4.687500e-02 : f32
      %57 = vector.broadcast %cst_38 : f32 to vector<8x1xf32>
      %58 = arith.mulf %56, %57 : vector<8x1xf32>
      %c0_39 = arith.constant 0 : index
      %c0_40 = arith.constant 0 : index
      %59 = vector.load %arg11[%c0_39, %c0_40] : memref<8x1xf32, #tpu.memory_space<vmem>>, vector<8x1xf32>
      %cst_41 = arith.constant 0.899999976 : f32
      %60 = vector.broadcast %cst_41 : f32 to vector<8x1xf32>
      %61 = arith.mulf %60, %59 : vector<8x1xf32>
      %62 = arith.subf %51, %61 : vector<8x1xf32>
      %cst_42 = arith.constant 4.687500e-02 : f32
      %63 = vector.broadcast %cst_42 : f32 to vector<8x1xf32>
      %64 = arith.mulf %62, %63 : vector<8x1xf32>
      %c0_43 = arith.constant 0 : index
      %c0_44 = arith.constant 0 : index
      %65 = vector.load %arg6[%c0_43, %c0_44] : memref<8x1xf32, #tpu.memory_space<vmem>>, vector<8x1xf32>
      %cst_45 = arith.constant 0.899999976 : f32
      %66 = vector.broadcast %cst_45 : f32 to vector<8x1xf32>
      %67 = arith.mulf %66, %65 : vector<8x1xf32>
      %68 = arith.addf %67, %58 : vector<8x1xf32>
      %c0_46 = arith.constant 0 : index
      %c0_47 = arith.constant 0 : index
      %69 = vector.load %arg7[%c0_46, %c0_47] : memref<8x1xf32, #tpu.memory_space<vmem>>, vector<8x1xf32>
      %cst_48 = arith.constant 0.899999976 : f32
      %70 = vector.broadcast %cst_48 : f32 to vector<8x1xf32>
      %71 = arith.mulf %70, %69 : vector<8x1xf32>
      %72 = arith.addf %71, %64 : vector<8x1xf32>
      %73 = tpu.reciprocal %72 : vector<8x1xf32> -> vector<8x1xf32>
      %74 = arith.mulf %68, %73 : vector<8x1xf32>
      %75 = arith.mulf %74, %73 : vector<8x1xf32>
      %76 = arith.mulf %75, %51 : vector<8x1xf32>
      %77 = arith.mulf %73, %52 : vector<8x1xf32>
      %78 = arith.subf %76, %77 : vector<8x1xf32>
      %c0_49 = arith.constant 0 : index
      %c0_50 = arith.constant 0 : index
      %79 = vector.load %arg8[%c0_49, %c0_50] : memref<8x3xf32, #tpu.memory_space<vmem>>, vector<8x1xf32>
      tpu.vector_store %arg8[%c0_49, %c0_50], %58 {strides = array<i32>} : memref<8x3xf32, #tpu.memory_space<vmem>>, vector<8x1xf32>,
      %c0_51 = arith.constant 0 : index
      %c1 = arith.constant 1 : index
      %80 = vector.load %arg8[%c0_51, %c1] : memref<8x3xf32, #tpu.memory_space<vmem>>, vector<8x1xf32>
      tpu.vector_store %arg8[%c0_51, %c1], %64 {strides = array<i32>} : memref<8x3xf32, #tpu.memory_space<vmem>>, vector<8x1xf32>,
      %c0_52 = arith.constant 0 : index
      %c2 = arith.constant 2 : index
      %81 = vector.load %arg8[%c0_52, %c2] : memref<8x3xf32, #tpu.memory_space<vmem>>, vector<8x1xf32>
      tpu.vector_store %arg8[%c0_52, %c2], %78 {strides = array<i32>} : memref<8x3xf32, #tpu.memory_space<vmem>>, vector<8x1xf32>,
    } else {
    }
    return
  }
  func.func @transform_0(%arg0: i32, %arg1: i32) -> (i32, i32) {
    %c0_i32 = arith.constant 0 : i32
    %c0_i32_0 = arith.constant 0 : i32
    return %arg0, %c0_i32 : i32, i32
  }
  func.func @transform_1(%arg0: i32, %arg1: i32) -> (i32, i32) {
    %c0_i32 = arith.constant 0 : i32
    %c0_i32_0 = arith.constant 0 : i32
    return %arg0, %c0_i32 : i32, i32
  }
  func.func @transform_2(%arg0: i32, %arg1: i32) -> (i32, i32) {
    %c0_i32 = arith.constant 0 : i32
    %c0_i32_0 = arith.constant 0 : i32
    return %c0_i32, %arg1 : i32, i32
  }
  func.func @transform_3(%arg0: i32, %arg1: i32) -> (i32, i32) {
    %c0_i32 = arith.constant 0 : i32
    %c0_i32_0 = arith.constant 0 : i32
    return %c0_i32, %arg1 : i32, i32
  }
  func.func @transform_4(%arg0: i32, %arg1: i32) -> (i32, i32) {
    %c0_i32 = arith.constant 0 : i32
    %c0_i32_0 = arith.constant 0 : i32
    return %arg0, %c0_i32 : i32, i32
  }
  func.func @transform_5(%arg0: i32, %arg1: i32) -> (i32, i32) {
    %c0_i32 = arith.constant 0 : i32
    %c0_i32_0 = arith.constant 0 : i32
    return %arg0, %c0_i32 : i32, i32
  }
  func.func @transform_6(%arg0: i32, %arg1: i32) -> (i32, i32) {
    %c0_i32 = arith.constant 0 : i32
    %c0_i32_0 = arith.constant 0 : i32
    return %arg0, %c0_i32 : i32, i32
  }
}

</mosaic_0001>

<llo_original>
// kernel: tpu_custom_call.1
$region0: #{tpu_custom_call.1}
  #allocation0 [shape = 'u32[]', space=smem, size = 0x4, offset = 0x4, fixed_abs, tag = 'smem constant byte address 0x4 - core index']
  #allocation1 [shape = 'u32[72,128]{1,0:T(1,128)}', space=vmem, size = 0x9000, scoped, tag = 'internal scratch']
  #allocation2 [shape = 'f32[8,1]{1,0:T(8,128)}', space=vmem, size = 0x1000, scoped, tag = 'scratch operand']
  #allocation3 [shape = 'f32[8,1]{1,0:T(8,128)}', space=vmem, size = 0x1000, scoped, tag = 'scratch operand']
  #allocation4 [shape = 'f32[8,1]{1,0:T(8,128)}', space=vmem, size = 0x1000, scoped, tag = 'scratch operand']
  #allocation5 [shape = 'f32[8,1]{1,0:T(8,128)}', space=vmem, size = 0x1000, scoped, tag = 'scratch operand']
  %s0 = inlined_call_operand.vmem [shape: f32[8,1], index: 0, kind: input, shape index: {}]
  %s1 = inlined_call_operand.vmem [shape: f32[8,1], index: 1, kind: input, shape index: {}]
  %s2 = inlined_call_operand.vmem [shape: f32[1,32], index: 2, kind: input, shape index: {}]
  %s3 = inlined_call_operand.vmem [shape: f32[1,32], index: 3, kind: input, shape index: {}]
  %s4 = inlined_call_operand.vmem [shape: f32[8,1], index: 4, kind: input, shape index: {}]
  %s5 = inlined_call_operand.vmem [shape: f32[8,1], index: 5, kind: input, shape index: {}]
  %s6 = inlined_call_operand.vmem [shape: f32[8,3], index: 6, kind: output, shape index: {}]
  %s7 = sld [smem:[#allocation0]]
  $region58: #{tpu_custom_call.1} parent=0
    _
  %s9 = ssub.s32 1, %s7
  %s10 = scalar_select 0, %s9, %s7
  // Predicated region
  $region2: #{tpu_custom_call.1} parent=0 // pred_check
    _
  $region3: #{tpu_custom_call.1} parent=0 // pred_check_branch
    %12 = sbr.rel (0) target = $region5
  $region4: #{tpu_custom_call.1} parent=0 // pred_region
    _
  $region5: #{tpu_custom_call.1} parent=0 // pred_fallthru
    _
  // Predicated region
  $region6: #{tpu_custom_call.1} parent=0 // pred_check
    _
  $region7: #{tpu_custom_call.1} parent=0 // pred_check_branch
    %14 = sbr.rel (0) target = $region9
  $region8: #{tpu_custom_call.1} parent=0 // pred_region
    _
  $region9: #{tpu_custom_call.1} parent=0 // pred_fallthru
    _
  // Predicated region
  $region10: #{tpu_custom_call.1} parent=0 // pred_check
    _
  $region11: #{tpu_custom_call.1} parent=0 // pred_check_branch
    %16 = sbr.rel (0) target = $region13
  $region12: #{tpu_custom_call.1} parent=0 // pred_region
    _
  $region13: #{tpu_custom_call.1} parent=0 // pred_fallthru
    _
  // Predicated region
  $region14: #{tpu_custom_call.1} parent=0 // pred_check
    _
  $region15: #{tpu_custom_call.1} parent=0 // pred_check_branch
    %18 = sbr.rel (0) target = $region17
  $region16: #{tpu_custom_call.1} parent=0 // pred_region
    _
  $region17: #{tpu_custom_call.1} parent=0 // pred_fallthru
    _
  // Predicated region
  $region18: #{tpu_custom_call.1} parent=0 // pred_check
    _
  $region19: #{tpu_custom_call.1} parent=0 // pred_check_branch
    %20 = sbr.rel (0) target = $region21
  $region20: #{tpu_custom_call.1} parent=0 // pred_region
    _
  $region21: #{tpu_custom_call.1} parent=0 // pred_fallthru
    _
  // Predicated region
  $region22: #{tpu_custom_call.1} parent=0 // pred_check
    _
  $region23: #{tpu_custom_call.1} parent=0 // pred_check_branch
    %22 = sbr.rel (0) target = $region25
  $region24: #{tpu_custom_call.1} parent=0 // pred_region
    _
  $region25: #{tpu_custom_call.1} parent=0 // pred_fallthru
    _
  %p23 = scmp.eq.s32.totalorder 0, 0
  // Predicated region
  $region26: #{tpu_custom_call.1} parent=0 // pred_check
    %p24 = pneg %p23
  $region27: #{tpu_custom_call.1} parent=0 // pred_check_branch
    %26 = sbr.rel (%p24) target = $region29
  $region28: #{tpu_custom_call.1} parent=0 // pred_region
    %vm27 = vcmask 7168
    %28 = vst.msk [vmem:[#allocation2] sm:$0xff] %vm27, 0.0
    %29 = vst.msk [vmem:[#allocation3] sm:$0xff] %vm27, 0.0
    %30 = vst.msk [vmem:[#allocation4] sm:$0xff] %vm27, 0.0
    %31 = vst.msk [vmem:[#allocation5] sm:$0xff] %vm27, 0.0
  $region29: #{tpu_custom_call.1} parent=0 // pred_fallthru
    _
  %s32 = smul.u32 0, 32
  %s33 = sadd.s32 %s32, 32
  %p34 = scmp.le.s32.totalorder %s33, 8
  %p35 = scmp.lt.s32.totalorder %s32, 8
  %p36 = scmp.gt.s32.totalorder %s33, 8
  %p37 = pnand %p35, %p36
  %p38 = pneg %p37
  %v39 = vld [vmem:[%s1] sm:$0xff]
  %v40 = vsub.f32 1.0, %v39
  %v41 = vld [vmem:[%s3] sm:$0x1]
  %43 = vset.pattern.permute.xlu0 0
  %44 = vperm.xlu0 %43, %v40
  %v45 = vpop.permute.xlu0 %44
  %v48 = vperm.slane %v41, 0
  %v50 = vadd.f32 %v45, %v48
  %v51 = vmax.f32 %v50, 0.0
  %v52 = vmul.f32 %v51, %v51
  %vm53 = vcmask 261120
  %v54 = vsel %vm53, %v52, 0.0
  %55 = vadd.xlane.f32.xlu0 %v54
  %v56 = vpop.xlane.xlu0 %55
  %v57 = vld [vmem:[#allocation4] sm:$0xff]
  %v58 = vadd.f32 %v57, %v56
  %vm59 = vcmask 7168
  %60 = vst.msk [vmem:[#allocation4] sm:$0xff] %vm59, %v58
  // Predicated region
  $region30: #{tpu_custom_call.1} parent=0 // pred_check
    %p61 = pneg %p34
  $region31: #{tpu_custom_call.1} parent=0 // pred_check_branch
    %63 = sbr.rel (%p61) target = $region33
  $region32: #{tpu_custom_call.1} parent=0 // pred_region
    %v64 = vld [vmem:[#allocation5] sm:$0xff]
    %v65 = vadd.f32 %v64, %v56
    %66 = vst.msk [vmem:[#allocation5] sm:$0xff] %vm59, %v65
  $region33: #{tpu_custom_call.1} parent=0 // pred_fallthru
    _
  // Predicated region
  $region34: #{tpu_custom_call.1} parent=0 // pred_check
    _
  $region35: #{tpu_custom_call.1} parent=0 // pred_check_branch
    %68 = sbr.rel (%p37) target = $region37
  $region36: #{tpu_custom_call.1} parent=0 // pred_region
    %v69 = vlaneseq
    %v70 = vand.u32 %v69, 127
    %v71 = vstv %s32
    %v72 = vadd.s32 %v70, %v71
    %vm73 = vcmp.lt.s32.totalorder %v72, 8
    %v74 = vld [vmem:[#allocation5] sm:$0xff]
    %v75 = vsel %vm73, 1, 0
    %vm76 = vcmp.eq.s32.totalorder %v75, 1
    %v77 = vsel %vm76, %v52, 0.0
    %v78 = vsel %vm53, %v77, 0.0
    %79 = vadd.xlane.f32.xlu0 %v78
    %v80 = vpop.xlane.xlu0 %79
    %v81 = vadd.f32 %v74, %v80
    %82 = vst.msk [vmem:[#allocation5] sm:$0xff] %vm59, %v81
  $region37: #{tpu_custom_call.1} parent=0 // pred_fallthru
    _
  %v83 = vld [vmem:[%s0] sm:$0xff]
  %v84 = vsub.f32 1.0, %v83
  %v85 = vld [vmem:[%s2] sm:$0x1]
  %87 = vset.pattern.permute.xlu0 0
  %88 = vperm.xlu0 %87, %v84
  %v89 = vpop.permute.xlu0 %88
  %v92 = vperm.slane %v85, 0
  %v94 = vadd.f32 %v89, %v92
  %v95 = vmax.f32 %v94, 0.0
  %v96 = vmul.f32 %v95, %v95
  %v97 = vsel %vm53, %v96, 0.0
  %98 = vadd.xlane.f32.xlu0 %v97
  %v99 = vpop.xlane.xlu0 %98
  %v100 = vld [vmem:[#allocation2] sm:$0xff]
  %v101 = vadd.f32 %v100, %v99
  %102 = vst.msk [vmem:[#allocation2] sm:$0xff] %vm59, %v101
  // Predicated region
  $region38: #{tpu_custom_call.1} parent=0 // pred_check
    %p103 = pneg %p34
  $region39: #{tpu_custom_call.1} parent=0 // pred_check_branch
    %105 = sbr.rel (%p103) target = $region41
  $region40: #{tpu_custom_call.1} parent=0 // pred_region
    %v106 = vld [vmem:[#allocation3] sm:$0xff]
    %v107 = vadd.f32 %v106, %v99
    %108 = vst.msk [vmem:[#allocation3] sm:$0xff] %vm59, %v107
  $region41: #{tpu_custom_call.1} parent=0 // pred_fallthru
    _
  // Predicated region
  $region42: #{tpu_custom_call.1} parent=0 // pred_check
    _
  $region43: #{tpu_custom_call.1} parent=0 // pred_check_branch
    %110 = sbr.rel (%p37) target = $region45
  $region44: #{tpu_custom_call.1} parent=0 // pred_region
    %v111 = vlaneseq
    %v112 = vand.u32 %v111, 127
    %v113 = vstv %s32
    %v114 = vadd.s32 %v112, %v113
    %vm115 = vcmp.lt.s32.totalorder %v114, 8
    %v116 = vld [vmem:[#allocation3] sm:$0xff]
    %v117 = vsel %vm115, 1, 0
    %vm118 = vcmp.eq.s32.totalorder %v117, 1
    %v119 = vsel %vm118, %v96, 0.0
    %v120 = vsel %vm53, %v119, 0.0
    %121 = vadd.xlane.f32.xlu0 %v120
    %v122 = vpop.xlane.xlu0 %121
    %v123 = vadd.f32 %v116, %v122
    %124 = vst.msk [vmem:[#allocation3] sm:$0xff] %vm59, %v123
  $region45: #{tpu_custom_call.1} parent=0 // pred_fallthru
    _
  // Predicated region
  $region46: #{tpu_custom_call.1} parent=0 // pred_check
    %p125 = pneg %p23
  $region47: #{tpu_custom_call.1} parent=0 // pred_check_branch
    %127 = sbr.rel (%p125) target = $region49
  $region48: #{tpu_custom_call.1} parent=0 // pred_region
    %v128 = vld [vmem:[#allocation2] sm:$0xff]
    %v129 = vld [vmem:[#allocation3] sm:$0xff]
    %v130 = vld [vmem:[#allocation5] sm:$0xff]
    %v131 = vmul.f32 %v130, 0.9
    %v132 = vsub.f32 %v129, %v131
    %v133 = vmul.f32 %v132, 0.046875
    %v134 = vld [vmem:[#allocation4] sm:$0xff]
    %v135 = vmul.f32 %v134, 0.9
    %v136 = vsub.f32 %v128, %v135
    %v137 = vmul.f32 %v136, 0.046875
    %v138 = vld [vmem:[%s4] sm:$0xff]
    %v139 = vmul.f32 %v138, 0.9
    %v140 = vadd.f32 %v139, %v133
    %v141 = vld [vmem:[%s5] sm:$0xff]
    %v142 = vmul.f32 %v141, 0.9
    %v143 = vadd.f32 %v142, %v137
    %v144 = vrcp.pop %v143
    %v145 = vmul.f32 %v143, %v144
    %v146 = vsub.f32 1.0, %v145
    %v147 = vmul.f32 %v144, %v146
    %v148 = vadd.f32 %v144, %v147
    %vm149 = vweird.f32 %v143
    %vm150 = vweird.f32 %v144
    %vm151 = vmor %vm149, %vm150
    %v152 = vsel %vm151, %v144, %v148
    %v153 = vand.u32 2147483647, %v143
    %vm154 = vcmp.eq.f32.partialorder %v153, 8.507059e+37
    %v155 = vand.u32 %v143, 2147483648
    %v156 = vor.u32 1.1754944e-38, %v155
    %v157 = vsel %vm154, %v156, %v152
    %v158 = vmul.f32 %v140, %v157
    %v159 = vmul.f32 %v158, %v157
    %v160 = vmul.f32 %v159, %v128
    %v161 = vmul.f32 %v157, %v129
    %v162 = vsub.f32 %v160, %v161
    %163 = vst.msk [vmem:[%s6] sm:$0xff] %vm59, %v133
    %165 = vrot.lane.b32.xlu0 %v137, 1
    %v166 = vpop.permute.xlu0 %165
    %vm168 = vcmask 15368
    %169 = vst.msk [vmem:[%s6] sm:$0xff] %vm168, %v166
    %171 = vrot.lane.b32.xlu0 %v162, 2
    %v172 = vpop.permute.xlu0 %171
    %vm174 = vcmask 23568
    %175 = vst.msk [vmem:[%s6] sm:$0xff] %vm174, %v172
  $region49: #{tpu_custom_call.1} parent=0 // pred_fallthru
    _
  // Predicated region
  $region50: #{tpu_custom_call.1} parent=0 // pred_check
    _
  $region51: #{tpu_custom_call.1} parent=0 // pred_check_branch
    %177 = sbr.rel (0) target = $region53
  $region52: #{tpu_custom_call.1} parent=0 // pred_region
    _
  $region53: #{tpu_custom_call.1} parent=0 // pred_fallthru
    _
  // Predicated region
  $region54: #{tpu_custom_call.1} parent=0 // pred_check
    _
  $region55: #{tpu_custom_call.1} parent=0 // pred_check_branch
    %179 = sbr.rel (0) target = $region57
  $region56: #{tpu_custom_call.1} parent=0 // pred_region
    _
  $region57: #{tpu_custom_call.1} parent=0 // pred_fallthru
    _

</llo_original>
